<compile_context>
chip_gen: v6e
topology: v6e:2x2x1
jax: 0.10.0
libtpu: 0.0.40
codegen_flags: <defaults>
</compile_context>

<pallas_src>
import functools

import jax
import jax.numpy as jnp
from jax.experimental import pallas as pl
from jax.experimental.pallas import tpu as pltpu


def _self_attention_kernel(x_ref, w_ref, o_ref, *, d_out):
    # x_ref : (Bt, C, L)    input tile, module's NCL layout
    # w_ref : (C, 3*D)      fused [WQ/sqrt(D) | WK | WV] weights
    # o_ref : (1, Bt, L*D)  lane-dense output slab (wrapper reshapes back)
    bt, c, l = x_ref.shape
    in_dtype = x_ref.dtype
    w = w_ref[...]

    # One batched transpose of the whole tile, then a single fused QKV
    # projection with M = Bt*L (fills MXU rows; f32 accumulation).
    xt = jnp.transpose(x_ref[...], (0, 2, 1)).reshape(bt * l, c)      # (Bt*L, C)
    qkv = jnp.dot(xt, w, preferred_element_type=jnp.float32)          # (Bt*L, 3D)
    qkv = qkv.reshape(bt, l, 3 * d_out)

    # Q columns of w already carry the 1/sqrt(D) scale.
    q = qkv[..., :d_out].astype(in_dtype)                             # (Bt, L, D)
    k = qkv[..., d_out:2 * d_out].astype(in_dtype)                    # (Bt, L, D)
    v = qkv[..., 2 * d_out:].astype(in_dtype)                         # (Bt, L, D)

    # Batched attention matmuls: one instruction stream per tile.
    s = jnp.einsum("bld,bmd->blm", q, k,
                   preferred_element_type=jnp.float32)                # (Bt, L, L)
    o = jnp.einsum("blm,bmd->bld", s.astype(in_dtype), v,
                   preferred_element_type=jnp.float32)                # (Bt, L, D)

    # Lane-dense store: last dim L*D instead of D (<128) -> unmasked vst.
    o_ref[...] = o.reshape(o_ref.shape).astype(o_ref.dtype)


def _default_batch_tile(B, C, L, D):
    """Pick the per-grid-step batch tile.

    Tiny problems run as one grid step (nothing to overlap, skip per-step
    overhead). Larger problems are budgeted for VMEM (conservative for v7x's
    64 MiB physical VMEM), target Bt*L >= 256 MXU rows, and keep an even
    number of >= 4 grid steps for balanced two-TensorCore sharding on v7x.
    """
    itemsize = 4
    # Per-batch-element in-kernel f32 footprint: double-buffered x tile and
    # output slab + QKV / S / O intermediates.
    per_elem = itemsize * (2 * C * L + 3 * L * D + L * L + L * D + 2 * L * D)
    budget = 20 * 1024 * 1024
    cap = max(1, budget // max(per_elem, 1))
    divisors = [d for d in range(1, B + 1) if B % d == 0 and d <= cap]
    if not divisors:
        return 1
    # Small problem that fits comfortably -> single grid step.
    if B <= cap and B * per_elem <= 4 * 1024 * 1024:
        return B
    even4 = [d for d in divisors if (B // d) >= 4 and (B // d) % 2 == 0]
    pool = even4 if even4 else divisors
    filling = [d for d in pool if d * L >= 256]
    return min(filling) if filling else max(pool)


@functools.partial(jax.jit, static_argnames=("batch_tile", "compute_dtype"))
def self_attention_forward(x, wq, wk, wv, batch_tile=None, compute_dtype=None):
    """x: (B, C, L); wq/wk/wv: (C, D)  ->  (B, L, D)."""
    B, C, L = x.shape
    D = wq.shape[1]
    out_dtype = x.dtype

    # Fuse the three projections into one weight and fold the 1/sqrt(D) scale
    # into the Q columns (free: fused into the concat that is needed anyway).
    scale = 1.0 / float(D) ** 0.5
    w_fused = jnp.concatenate([wq * scale, wk, wv], axis=1)           # (C, 3D)

    if compute_dtype is not None:
        # Optional bf16 operand path (f32 MXU accumulation is kept in-kernel).
        x = x.astype(compute_dtype)
        w_fused = w_fused.astype(compute_dtype)

    if batch_tile is None:
        batch_tile = _default_batch_tile(B, C, L, D)
    assert B % batch_tile == 0, "batch_tile must divide the batch size"
    steps = B // batch_tile

    kernel = functools.partial(_self_attention_kernel, d_out=D)

    out = pl.pallas_call(
        kernel,
        # Output exposed lane-dense as (steps, Bt, L*D); this is bit-identical
        # to (B, L, D) in HBM row-major order, so the reshape below is free.
        out_shape=jax.ShapeDtypeStruct((steps, batch_tile, L * D), out_dtype),
        grid_spec=pltpu.PrefetchScalarGridSpec(
            num_scalar_prefetch=0,
            grid=(steps,),
            in_specs=[
                pl.BlockSpec((batch_tile, C, L), lambda b: (b, 0, 0)),
                pl.BlockSpec((C, 3 * D), lambda b: (0, 0)),
            ],
            out_specs=pl.BlockSpec((1, batch_tile, L * D),
                                   lambda b: (b, 0, 0)),
        ),
        compiler_params=pltpu.CompilerParams(
            dimension_semantics=("parallel",),
            vmem_limit_bytes=32 * 1024 * 1024),
    )(x, w_fused)

    return out.reshape(B, L, D)


def _reference(x, wq, wk, wv):
    # Pure-JAX reference mirroring the PyTorch forward (no softmax).
    xt = jnp.transpose(x, (0, 2, 1))                        # (B, L, C)
    q = xt @ wq
    k = xt @ wk
    v = xt @ wv
    s = (q @ jnp.transpose(k, (0, 2, 1))) / (wq.shape[1] ** 0.5)
    return s @ v


if __name__ == "__main__":
    # Small shapes consistent with the module: batch=2, input channels=4,
    # sequence length=16, output (attention) dim=32.
    B, C_IN, L, D_OUT = 2, 4, 16, 32

    key = jax.random.PRNGKey(0)
    kx, kq, kk, kv = jax.random.split(key, 4)

    x = jax.random.normal(kx, (B, C_IN, L), dtype=jnp.float32)
    # PyTorch uses xavier_uniform_ on each of WQ/WK/WV.
    bound = (6.0 / (C_IN + D_OUT)) ** 0.5
    wq = jax.random.uniform(kq, (C_IN, D_OUT), jnp.float32, -bound, bound)
    wk = jax.random.uniform(kk, (C_IN, D_OUT), jnp.float32, -bound, bound)
    wv = jax.random.uniform(kv, (C_IN, D_OUT), jnp.float32, -bound, bound)

    out = self_attention_forward(x, wq, wk, wv)
    out = jax.block_until_ready(out)

    ref = _reference(x, wq, wk, wv)
    assert out.shape == (B, L, D_OUT)
    assert jnp.allclose(out, ref, atol=1e-4, rtol=1e-4), "mismatch vs reference"

    print("KERNEL_OK")
</pallas_src>

<mosaic_0001>
module attributes {stable_mosaic.version = 11 : i64} {
  func.func @_self_attention_kernel(%arg0: i32, %arg1: memref<2x4x16xf32, #tpu.memory_space<vmem>>, %arg2: memref<4x96xf32, #tpu.memory_space<vmem>>, %arg3: memref<1x2x512xf32, #tpu.memory_space<vmem>>) attributes {dimension_semantics = [#tpu.dimension_semantics<parallel>], iteration_bounds = array<i64: 1>, scalar_prefetch = 0 : i64, scratch_operands = 0 : i64, tpu.core_type = #tpu.core_type<tc>, window_params = [{transform_indices = @transform_0, window_bounds = array<i64: 2, 4, 16>}, {pipeline_mode = #tpu.pipeline_mode<synchronous>, transform_indices = @transform_1, window_bounds = array<i64: 4, 96>}, {transform_indices = @transform_2, window_bounds = array<i64: 1, 2, 512>}]} {
    %c0 = arith.constant 0 : index
    %c0_0 = arith.constant 0 : index
    %0 = vector.load %arg2[%c0, %c0_0] : memref<4x96xf32, #tpu.memory_space<vmem>>, vector<4x96xf32>
    %c0_1 = arith.constant 0 : index
    %c0_2 = arith.constant 0 : index
    %c0_3 = arith.constant 0 : index
    %1 = vector.load %arg1[%c0_1, %c0_2, %c0_3] : memref<2x4x16xf32, #tpu.memory_space<vmem>>, vector<2x4x16xf32>
    %2 = tpu.transpose %1, [0, 2, 1] : vector<2x4x16xf32> -> vector<2x16x4xf32>
    %3 = vector.shape_cast %2 : vector<2x16x4xf32> to vector<32x4xf32>
    %cst = arith.constant dense<0.000000e+00> : vector<32x96xf32>
    %4 = tpu.matmul %3, %0, %cst {dimension_numbers = #tpu.dot_dimension_numbers<[1], [0], [0], [1], [0, 0, 1, 1], [], []>} : vector<32x4xf32>, vector<4x96xf32>, vector<32x96xf32> -> vector<32x96xf32>
    %5 = vector.shape_cast %4 : vector<32x96xf32> to vector<2x16x96xf32>
    %6 = vector.extract_strided_slice %5 {offsets = [0, 0, 0], sizes = [2, 16, 32], strides = [1, 1, 1]} : vector<2x16x96xf32> to vector<2x16x32xf32>
    %7 = vector.extract_strided_slice %5 {offsets = [0, 0, 32], sizes = [2, 16, 32], strides = [1, 1, 1]} : vector<2x16x96xf32> to vector<2x16x32xf32>
    %8 = vector.extract_strided_slice %5 {offsets = [0, 0, 64], sizes = [2, 16, 32], strides = [1, 1, 1]} : vector<2x16x96xf32> to vector<2x16x32xf32>
    "tpu.trace_start"() <{level = 10 : i32, message = "bld,bmd->blm"}> : () -> ()
    %cst_4 = arith.constant dense<0.000000e+00> : vector<2x16x16xf32>
    %9 = tpu.matmul %6, %7, %cst_4 {dimension_numbers = #tpu.dot_dimension_numbers<[2], [2], [1], [1], [0, 0, 0, 1, 1, 1], [0], [0]>} : vector<2x16x32xf32>, vector<2x16x32xf32>, vector<2x16x16xf32> -> vector<2x16x16xf32>
    "tpu.trace_stop"() : () -> ()
    "tpu.trace_start"() <{level = 10 : i32, message = "blm,bmd->bld"}> : () -> ()
    %cst_5 = arith.constant dense<0.000000e+00> : vector<2x16x32xf32>
    %10 = tpu.matmul %9, %8, %cst_5 {dimension_numbers = #tpu.dot_dimension_numbers<[2], [1], [1], [2], [0, 0, 0, 1, 1, 2], [0], [0]>} : vector<2x16x16xf32>, vector<2x16x32xf32>, vector<2x16x32xf32> -> vector<2x16x32xf32>
    "tpu.trace_stop"() : () -> ()
    %11 = vector.shape_cast %10 : vector<2x16x32xf32> to vector<1x2x512xf32>
    %c0_6 = arith.constant 0 : index
    %c0_7 = arith.constant 0 : index
    %c0_8 = arith.constant 0 : index
    %12 = vector.load %arg3[%c0_6, %c0_7, %c0_8] : memref<1x2x512xf32, #tpu.memory_space<vmem>>, vector<1x2x512xf32>
    tpu.vector_store %arg3[%c0_6, %c0_7, %c0_8], %11 {strides = array<i32>} : memref<1x2x512xf32, #tpu.memory_space<vmem>>, vector<1x2x512xf32>,
    return
  }
  func.func @transform_0(%arg0: i32) -> (i32, i32, i32) {
    %c0_i32 = arith.constant 0 : i32
    %c0_i32_0 = arith.constant 0 : i32
    %c0_i32_1 = arith.constant 0 : i32
    return %arg0, %c0_i32, %c0_i32_0 : i32, i32, i32
  }
  func.func @transform_1(%arg0: i32) -> (i32, i32) {
    %c0_i32 = arith.constant 0 : i32
    %c0_i32_0 = arith.constant 0 : i32
    %c0_i32_1 = arith.constant 0 : i32
    return %c0_i32, %c0_i32_0 : i32, i32
  }
  func.func @transform_2(%arg0: i32) -> (i32, i32, i32) {
    %c0_i32 = arith.constant 0 : i32
    %c0_i32_0 = arith.constant 0 : i32
    %c0_i32_1 = arith.constant 0 : i32
    return %arg0, %c0_i32, %c0_i32_0 : i32, i32, i32
  }
}

</mosaic_0001>

<llo_original>
// kernel: self_attention_forward.1
$region0: #{self_attention_forward.1}
  #allocation0 [shape = 'u32[]', space=smem, size = 0x4, offset = 0x4, fixed_abs, tag = 'smem constant byte address 0x4 - core index']
  #allocation1 [shape = 'u32[144,128]{1,0:T(1,128)}', space=vmem, size = 0x12000, scoped, tag = 'internal scratch']
  %s0 = inlined_call_operand.vmem [shape: f32[2,4,16], index: 0, kind: input, shape index: {}]
  %s1 = inlined_call_operand.vmem [shape: f32[4,96], index: 1, kind: input, shape index: {}]
  %s2 = inlined_call_operand.vmem [shape: f32[1,2,512], index: 2, kind: output, shape index: {}]
  %s3 = sld [smem:[#allocation0]]
  $region18: #{self_attention_forward.1} parent=0
    _
  %s5 = ssub.s32 1, %s3
  %s6 = scalar_select 0, %s5, %s3
  // Predicated region
  $region2: #{self_attention_forward.1} parent=0 // pred_check
    _
  $region3: #{self_attention_forward.1} parent=0 // pred_check_branch
    %8 = sbr.rel (0) target = $region5
  $region4: #{self_attention_forward.1} parent=0 // pred_region
    _
  $region5: #{self_attention_forward.1} parent=0 // pred_fallthru
    _
  // Predicated region
  $region6: #{self_attention_forward.1} parent=0 // pred_check
    _
  $region7: #{self_attention_forward.1} parent=0 // pred_check_branch
    %10 = sbr.rel (0) target = $region9
  $region8: #{self_attention_forward.1} parent=0 // pred_region
    _
  $region9: #{self_attention_forward.1} parent=0 // pred_fallthru
    _
  %v11 = vld [vmem:[%s1] sm:$0xf]
  %v12 = vld [vmem:[%s0] sm:$0xf]
  %v13 = vld [vmem:[%s0 + $0x4] sm:$0xf]
  %14 = vxpose.xlu0.b32.start [1/16] %v12, 128
  %15 = vxpose.xlu0.b32.cont [2/16] 0.0, 128
  %16 = vxpose.xlu0.b32.cont [3/16] 0.0, 128
  %17 = vxpose.xlu0.b32.cont [4/16] 0.0, 128
  %18 = vxpose.xlu0.b32.cont [5/16] 0.0, 128
  %19 = vxpose.xlu0.b32.cont [6/16] 0.0, 128
  %20 = vxpose.xlu0.b32.cont [7/16] 0.0, 128
  %21 = vxpose.xlu0.b32.cont [8/16] 0.0, 128
  %22 = vxpose.xlu0.b32.cont [9/16] 0.0, 128
  %23 = vxpose.xlu0.b32.cont [10/16] 0.0, 128
  %24 = vxpose.xlu0.b32.cont [11/16] 0.0, 128
  %25 = vxpose.xlu0.b32.cont [12/16] 0.0, 128
  %26 = vxpose.xlu0.b32.cont [13/16] 0.0, 128
  %27 = vxpose.xlu0.b32.cont [14/16] 0.0, 128
  %28 = vxpose.xlu0.b32.cont [15/16] 0.0, 128
  %29 = vxpose.xlu0.b32.end [16/16] 0.0, 128
  %v30 = vpop.trf.xlu0
  %v31 = vpop.trf.xlu0
  %v32 = vpop.trf.xlu0
  %v33 = vpop.trf.xlu0
  %v34 = vpop.trf.xlu0
  %v35 = vpop.trf.xlu0
  %v36 = vpop.trf.xlu0
  %v37 = vpop.trf.xlu0
  %v38 = vpop.trf.xlu0
  %v39 = vpop.trf.xlu0
  %v40 = vpop.trf.xlu0
  %v41 = vpop.trf.xlu0
  %v42 = vpop.trf.xlu0
  %v43 = vpop.trf.xlu0
  %v44 = vpop.trf.xlu0
  %v45 = vpop.trf.xlu0
  %46 = vxpose.xlu0.b32.start [1/16] %v13, 128
  %47 = vxpose.xlu0.b32.cont [2/16] 0.0, 128
  %48 = vxpose.xlu0.b32.cont [3/16] 0.0, 128
  %49 = vxpose.xlu0.b32.cont [4/16] 0.0, 128
  %50 = vxpose.xlu0.b32.cont [5/16] 0.0, 128
  %51 = vxpose.xlu0.b32.cont [6/16] 0.0, 128
  %52 = vxpose.xlu0.b32.cont [7/16] 0.0, 128
  %53 = vxpose.xlu0.b32.cont [8/16] 0.0, 128
  %54 = vxpose.xlu0.b32.cont [9/16] 0.0, 128
  %55 = vxpose.xlu0.b32.cont [10/16] 0.0, 128
  %56 = vxpose.xlu0.b32.cont [11/16] 0.0, 128
  %57 = vxpose.xlu0.b32.cont [12/16] 0.0, 128
  %58 = vxpose.xlu0.b32.cont [13/16] 0.0, 128
  %59 = vxpose.xlu0.b32.cont [14/16] 0.0, 128
  %60 = vxpose.xlu0.b32.cont [15/16] 0.0, 128
  %61 = vxpose.xlu0.b32.end [16/16] 0.0, 128
  %v62 = vpop.trf.xlu0
  %v63 = vpop.trf.xlu0
  %v64 = vpop.trf.xlu0
  %v65 = vpop.trf.xlu0
  %v66 = vpop.trf.xlu0
  %v67 = vpop.trf.xlu0
  %v68 = vpop.trf.xlu0
  %v69 = vpop.trf.xlu0
  %v70 = vpop.trf.xlu0
  %v71 = vpop.trf.xlu0
  %v72 = vpop.trf.xlu0
  %v73 = vpop.trf.xlu0
  %v74 = vpop.trf.xlu0
  %v75 = vpop.trf.xlu0
  %v76 = vpop.trf.xlu0
  %v77 = vpop.trf.xlu0
  %vm78 = vcmask 31744
  %v80 = vsel %vm78, %v30, 0
  %v83 = vsel %vm78, %v31, 0
  %v86 = vsel %vm78, %v62, 0
  %v89 = vsel %vm78, %v63, 0
  %vm91 = vcmask 1043456
  %v93 = vsel %vm91, %v11, 0
  %95 = vmatprep.subr.mxu0 0.0
  %96 = vmatpush1.msra.mxu0 0.0
  %97 = vmatprep.subr.mxu0 0.0
  %98 = vmatpush1.msra.mxu0 0.0
  %99 = vmatprep.subr.mxu0 0.0
  %100 = vmatpush1.msra.mxu0 0.0
  %101 = vmatprep.subr.mxu0 0.0
  %102 = vmatpush1.msra.mxu0 0.0
  %103 = vmatprep.subr.mxu0 0.0
  %104 = vmatpush1.msra.mxu0 0.0
  %105 = vmatprep.subr.mxu0 0.0
  %106 = vmatpush1.msra.mxu0 0.0
  %107 = vmatprep.subr.mxu0 0.0
  %108 = vmatpush1.msra.mxu0 0.0
  %109 = vmatprep.subr.mxu0 0.0
  %110 = vmatpush1.msra.mxu0 0.0
  %111 = vmatprep.subr.mxu0 0.0
  %112 = vmatpush1.msra.mxu0 0.0
  %113 = vmatprep.subr.mxu0 0.0
  %114 = vmatpush1.msra.mxu0 0.0
  %115 = vmatprep.subr.mxu0 0.0
  %116 = vmatpush1.msra.mxu0 0.0
  %117 = vmatprep.subr.mxu0 0.0
  %118 = vmatpush1.msra.mxu0 0.0
  %119 = vmatprep.subr.mxu0 0.0
  %120 = vmatpush1.msra.mxu0 0.0
  %121 = vmatprep.subr.mxu0 0.0
  %122 = vmatpush1.msra.mxu0 0.0
  %123 = vmatprep.subr.mxu0 0.0
  %124 = vmatpush1.msra.mxu0 0.0
  %125 = vmatprep.subr.mxu0 0.0
  %126 = vmatpush1.msra.mxu0 %v93
  %127 = vmatprep.subr.mxu0 0.0
  %128 = vmatpush2.msra.mxu0 0.0
  %129 = vmatprep.subr.mxu0 0.0
  %130 = vmatpush2.msra.mxu0 0.0
  %131 = vmatprep.subr.mxu0 0.0
  %132 = vmatpush2.msra.mxu0 0.0
  %133 = vmatprep.subr.mxu0 0.0
  %134 = vmatpush2.msra.mxu0 0.0
  %135 = vmatprep.subr.mxu0 0.0
  %136 = vmatpush2.msra.mxu0 0.0
  %137 = vmatprep.subr.mxu0 0.0
  %138 = vmatpush2.msra.mxu0 0.0
  %139 = vmatprep.subr.mxu0 0.0
  %140 = vmatpush2.msra.mxu0 0.0
  %141 = vmatprep.subr.mxu0 0.0
  %142 = vmatpush2.msra.mxu0 0.0
  %143 = vmatprep.subr.mxu0 0.0
  %144 = vmatpush2.msra.mxu0 0.0
  %145 = vmatprep.subr.mxu0 0.0
  %146 = vmatpush2.msra.mxu0 0.0
  %147 = vmatprep.subr.mxu0 0.0
  %148 = vmatpush2.msra.mxu0 0.0
  %149 = vmatprep.subr.mxu0 0.0
  %150 = vmatpush2.msra.mxu0 0.0
  %151 = vmatprep.subr.mxu0 0.0
  %152 = vmatpush2.msra.mxu0 0.0
  %153 = vmatprep.subr.mxu0 0.0
  %154 = vmatpush2.msra.mxu0 0.0
  %155 = vmatprep.subr.mxu0 0.0
  %156 = vmatpush2.msra.mxu0 0.0
  %157 = vmatprep.subr.mxu0 0.0
  %158 = vmatpush2.msra.mxu0 0.0
  %159 = vmatprep.mubr.f32.mxu0 0.0
  %160 = vmatmul.mubr.f32.gmra.mxu0 %v80
  %v161 = vpop.f32.mrf.mxu0
  %v162 = vadd.f32 0.0, %v161
  %v163 = vpop.f32.mrf.mxu0
  %164 = vmatprep.mubr.f32.mxu0 0.0
  %165 = vmatmul.mubr.f32.gmra.mxu0 %v83
  %v166 = vpop.f32.mrf.mxu0
  %v167 = vadd.f32 0.0, %v166
  %v168 = vpop.f32.mrf.mxu0
  %169 = vmatprep.mubr.f32.mxu0 0.0
  %170 = vmatmul.mubr.f32.gmra.mxu0 %v86
  %v171 = vpop.f32.mrf.mxu0
  %v172 = vadd.f32 0.0, %v171
  %v173 = vpop.f32.mrf.mxu0
  %174 = vmatprep.mubr.f32.mxu0 0.0
  %175 = vmatmul.mubr.f32.gmra.mxu0 %v89
  %v176 = vpop.f32.mrf.mxu0
  %v177 = vadd.f32 0.0, %v176
  %v178 = vpop.f32.mrf.mxu0
  %179 = vdwg.mxu0
  %182 = vrot.lane.b32.xlu0 %v162, 96
  %v183 = vpop.permute.xlu0 %182
  %184 = vrot.lane.b32.xlu0 %v167, 96
  %v185 = vpop.permute.xlu0 %184
  %vm186 = vcmask 261120
  %v187 = vsel %vm186, %v162, 0
  %v189 = vsel %vm186, %v167, 0
  %v191 = vsel %vm186, %v183, 0
  %v193 = vsel %vm186, %v185, 0
  %195 = vmatprep.subr.mxu0 0.0
  %196 = vmatpush1.xpose.msra.mxu0 0.0
  %197 = vmatprep.subr.mxu0 0.0
  %198 = vmatpush1.xpose.msra.mxu0 0.0
  %199 = vmatprep.subr.mxu0 0.0
  %200 = vmatpush1.xpose.msra.mxu0 0.0
  %201 = vmatprep.subr.mxu0 0.0
  %202 = vmatpush1.xpose.msra.mxu0 0.0
  %203 = vmatprep.subr.mxu0 0.0
  %204 = vmatpush1.xpose.msra.mxu0 0.0
  %205 = vmatprep.subr.mxu0 0.0
  %206 = vmatpush1.xpose.msra.mxu0 0.0
  %207 = vmatprep.subr.mxu0 0.0
  %208 = vmatpush1.xpose.msra.mxu0 0.0
  %209 = vmatprep.subr.mxu0 0.0
  %210 = vmatpush1.xpose.msra.mxu0 0.0
  %211 = vmatprep.subr.mxu0 0.0
  %212 = vmatpush1.xpose.msra.mxu0 0.0
  %213 = vmatprep.subr.mxu0 0.0
  %214 = vmatpush1.xpose.msra.mxu0 0.0
  %215 = vmatprep.subr.mxu0 0.0
  %216 = vmatpush1.xpose.msra.mxu0 0.0
  %217 = vmatprep.subr.mxu0 0.0
  %218 = vmatpush1.xpose.msra.mxu0 0.0
  %219 = vmatprep.subr.mxu0 0.0
  %220 = vmatpush1.xpose.msra.mxu0 0.0
  %221 = vmatprep.subr.mxu0 0.0
  %222 = vmatpush1.xpose.msra.mxu0 0.0
  %223 = vmatprep.subr.mxu0 0.0
  %224 = vmatpush1.xpose.msra.mxu0 %v193
  %225 = vmatprep.subr.mxu0 0.0
  %226 = vmatpush1.xpose.msra.mxu0 %v191
  %227 = vmatprep.subr.mxu0 0.0
  %228 = vmatpush2.xpose.msra.mxu0 0.0
  %229 = vmatprep.subr.mxu0 0.0
  %230 = vmatpush2.xpose.msra.mxu0 0.0
  %231 = vmatprep.subr.mxu0 0.0
  %232 = vmatpush2.xpose.msra.mxu0 0.0
  %233 = vmatprep.subr.mxu0 0.0
  %234 = vmatpush2.xpose.msra.mxu0 0.0
  %235 = vmatprep.subr.mxu0 0.0
  %236 = vmatpush2.xpose.msra.mxu0 0.0
  %237 = vmatprep.subr.mxu0 0.0
  %238 = vmatpush2.xpose.msra.mxu0 0.0
  %239 = vmatprep.subr.mxu0 0.0
  %240 = vmatpush2.xpose.msra.mxu0 0.0
  %241 = vmatprep.subr.mxu0 0.0
  %242 = vmatpush2.xpose.msra.mxu0 0.0
  %243 = vmatprep.subr.mxu0 0.0
  %244 = vmatpush2.xpose.msra.mxu0 0.0
  %245 = vmatprep.subr.mxu0 0.0
  %246 = vmatpush2.xpose.msra.mxu0 0.0
  %247 = vmatprep.subr.mxu0 0.0
  %248 = vmatpush2.xpose.msra.mxu0 0.0
  %249 = vmatprep.subr.mxu0 0.0
  %250 = vmatpush2.xpose.msra.mxu0 0.0
  %251 = vmatprep.subr.mxu0 0.0
  %252 = vmatpush2.xpose.msra.mxu0 0.0
  %253 = vmatprep.subr.mxu0 0.0
  %254 = vmatpush2.xpose.msra.mxu0 0.0
  %255 = vmatprep.subr.mxu0 0.0
  %256 = vmatpush2.xpose.msra.mxu0 0.0
  %257 = vmatprep.subr.mxu0 0.0
  %258 = vmatpush2.xpose.msra.mxu0 0.0
  %259 = vmatprep.mubr.f32.mxu0 0.0
  %260 = vmatmul.mubr.f32.gmra.mxu0 %v187
  %v261 = vpop.f32.mrf.mxu0
  %v262 = vadd.f32 0.0, %v261
  %v263 = vpop.f32.mrf.mxu0
  %264 = vmatprep.mubr.f32.mxu0 0.0
  %265 = vmatmul.mubr.f32.gmra.mxu0 %v189
  %v266 = vpop.f32.mrf.mxu0
  %v267 = vadd.f32 0.0, %v266
  %v268 = vpop.f32.mrf.mxu0
  %269 = vdwg.mxu0
  %272 = vrot.lane.b32.xlu0 %v172, 96
  %v273 = vpop.permute.xlu0 %272
  %274 = vrot.lane.b32.xlu0 %v177, 96
  %v275 = vpop.permute.xlu0 %274
  %v276 = vsel %vm186, %v172, 0
  %v278 = vsel %vm186, %v177, 0
  %v280 = vsel %vm186, %v273, 0
  %v282 = vsel %vm186, %v275, 0
  %284 = vmatprep.subr.mxu0 0.0
  %285 = vmatpush1.xpose.msra.mxu0 0.0
  %286 = vmatprep.subr.mxu0 0.0
  %287 = vmatpush1.xpose.msra.mxu0 0.0
  %288 = vmatprep.subr.mxu0 0.0
  %289 = vmatpush1.xpose.msra.mxu0 0.0
  %290 = vmatprep.subr.mxu0 0.0
  %291 = vmatpush1.xpose.msra.mxu0 0.0
  %292 = vmatprep.subr.mxu0 0.0
  %293 = vmatpush1.xpose.msra.mxu0 0.0
  %294 = vmatprep.subr.mxu0 0.0
  %295 = vmatpush1.xpose.msra.mxu0 0.0
  %296 = vmatprep.subr.mxu0 0.0
  %297 = vmatpush1.xpose.msra.mxu0 0.0
  %298 = vmatprep.subr.mxu0 0.0
  %299 = vmatpush1.xpose.msra.mxu0 0.0
  %300 = vmatprep.subr.mxu0 0.0
  %301 = vmatpush1.xpose.msra.mxu0 0.0
  %302 = vmatprep.subr.mxu0 0.0
  %303 = vmatpush1.xpose.msra.mxu0 0.0
  %304 = vmatprep.subr.mxu0 0.0
  %305 = vmatpush1.xpose.msra.mxu0 0.0
  %306 = vmatprep.subr.mxu0 0.0
  %307 = vmatpush1.xpose.msra.mxu0 0.0
  %308 = vmatprep.subr.mxu0 0.0
  %309 = vmatpush1.xpose.msra.mxu0 0.0
  %310 = vmatprep.subr.mxu0 0.0
  %311 = vmatpush1.xpose.msra.mxu0 0.0
  %312 = vmatprep.subr.mxu0 0.0
  %313 = vmatpush1.xpose.msra.mxu0 %v282
  %314 = vmatprep.subr.mxu0 0.0
  %315 = vmatpush1.xpose.msra.mxu0 %v280
  %316 = vmatprep.subr.mxu0 0.0
  %317 = vmatpush2.xpose.msra.mxu0 0.0
  %318 = vmatprep.subr.mxu0 0.0
  %319 = vmatpush2.xpose.msra.mxu0 0.0
  %320 = vmatprep.subr.mxu0 0.0
  %321 = vmatpush2.xpose.msra.mxu0 0.0
  %322 = vmatprep.subr.mxu0 0.0
  %323 = vmatpush2.xpose.msra.mxu0 0.0
  %324 = vmatprep.subr.mxu0 0.0
  %325 = vmatpush2.xpose.msra.mxu0 0.0
  %326 = vmatprep.subr.mxu0 0.0
  %327 = vmatpush2.xpose.msra.mxu0 0.0
  %328 = vmatprep.subr.mxu0 0.0
  %329 = vmatpush2.xpose.msra.mxu0 0.0
  %330 = vmatprep.subr.mxu0 0.0
  %331 = vmatpush2.xpose.msra.mxu0 0.0
  %332 = vmatprep.subr.mxu0 0.0
  %333 = vmatpush2.xpose.msra.mxu0 0.0
  %334 = vmatprep.subr.mxu0 0.0
  %335 = vmatpush2.xpose.msra.mxu0 0.0
  %336 = vmatprep.subr.mxu0 0.0
  %337 = vmatpush2.xpose.msra.mxu0 0.0
  %338 = vmatprep.subr.mxu0 0.0
  %339 = vmatpush2.xpose.msra.mxu0 0.0
  %340 = vmatprep.subr.mxu0 0.0
  %341 = vmatpush2.xpose.msra.mxu0 0.0
  %342 = vmatprep.subr.mxu0 0.0
  %343 = vmatpush2.xpose.msra.mxu0 0.0
  %344 = vmatprep.subr.mxu0 0.0
  %345 = vmatpush2.xpose.msra.mxu0 0.0
  %346 = vmatprep.subr.mxu0 0.0
  %347 = vmatpush2.xpose.msra.mxu0 0.0
  %348 = vmatprep.mubr.f32.mxu0 0.0
  %349 = vmatmul.mubr.f32.gmra.mxu0 %v276
  %v350 = vpop.f32.mrf.mxu0
  %v351 = vadd.f32 0.0, %v350
  %v352 = vpop.f32.mrf.mxu0
  %353 = vmatprep.mubr.f32.mxu0 0.0
  %354 = vmatmul.mubr.f32.gmra.mxu0 %v278
  %v355 = vpop.f32.mrf.mxu0
  %v356 = vadd.f32 0.0, %v355
  %v357 = vpop.f32.mrf.mxu0
  %358 = vdwg.mxu0
  %359 = vrot.lane.b32.xlu0 %v162, 64
  %v360 = vpop.permute.xlu0 %359
  %361 = vrot.lane.b32.xlu0 %v167, 64
  %v362 = vpop.permute.xlu0 %361
  %vm365 = vcmask 130048
  %v367 = vsel %vm365, %v262, 0
  %v370 = vsel %vm365, %v267, 0
  %372 = vmatprep.subr.mxu0 0.0
  %373 = vmatpush1.msra.mxu0 0.0
  %374 = vmatprep.subr.mxu0 0.0
  %375 = vmatpush1.msra.mxu0 0.0
  %376 = vmatprep.subr.mxu0 0.0
  %377 = vmatpush1.msra.mxu0 0.0
  %378 = vmatprep.subr.mxu0 0.0
  %379 = vmatpush1.msra.mxu0 0.0
  %380 = vmatprep.subr.mxu0 0.0
  %381 = vmatpush1.msra.mxu0 0.0
  %382 = vmatprep.subr.mxu0 0.0
  %383 = vmatpush1.msra.mxu0 0.0
  %384 = vmatprep.subr.mxu0 0.0
  %385 = vmatpush1.msra.mxu0 0.0
  %386 = vmatprep.subr.mxu0 0.0
  %387 = vmatpush1.msra.mxu0 0.0
  %388 = vmatprep.subr.mxu0 0.0
  %389 = vmatpush1.msra.mxu0 0.0
  %390 = vmatprep.subr.mxu0 0.0
  %391 = vmatpush1.msra.mxu0 0.0
  %392 = vmatprep.subr.mxu0 0.0
  %393 = vmatpush1.msra.mxu0 0.0
  %394 = vmatprep.subr.mxu0 0.0
  %395 = vmatpush1.msra.mxu0 0.0
  %396 = vmatprep.subr.mxu0 0.0
  %397 = vmatpush1.msra.mxu0 0.0
  %398 = vmatprep.subr.mxu0 0.0
  %399 = vmatpush1.msra.mxu0 0.0
  %400 = vmatprep.subr.mxu0 0.0
  %401 = vmatpush1.msra.mxu0 %v362
  %402 = vmatprep.subr.mxu0 0.0
  %403 = vmatpush1.msra.mxu0 %v360
  %404 = vmatprep.subr.mxu0 0.0
  %405 = vmatpush2.msra.mxu0 0.0
  %406 = vmatprep.subr.mxu0 0.0
  %407 = vmatpush2.msra.mxu0 0.0
  %408 = vmatprep.subr.mxu0 0.0
  %409 = vmatpush2.msra.mxu0 0.0
  %410 = vmatprep.subr.mxu0 0.0
  %411 = vmatpush2.msra.mxu0 0.0
  %412 = vmatprep.subr.mxu0 0.0
  %413 = vmatpush2.msra.mxu0 0.0
  %414 = vmatprep.subr.mxu0 0.0
  %415 = vmatpush2.msra.mxu0 0.0
  %416 = vmatprep.subr.mxu0 0.0
  %417 = vmatpush2.msra.mxu0 0.0
  %418 = vmatprep.subr.mxu0 0.0
  %419 = vmatpush2.msra.mxu0 0.0
  %420 = vmatprep.subr.mxu0 0.0
  %421 = vmatpush2.msra.mxu0 0.0
  %422 = vmatprep.subr.mxu0 0.0
  %423 = vmatpush2.msra.mxu0 0.0
  %424 = vmatprep.subr.mxu0 0.0
  %425 = vmatpush2.msra.mxu0 0.0
  %426 = vmatprep.subr.mxu0 0.0
  %427 = vmatpush2.msra.mxu0 0.0
  %428 = vmatprep.subr.mxu0 0.0
  %429 = vmatpush2.msra.mxu0 0.0
  %430 = vmatprep.subr.mxu0 0.0
  %431 = vmatpush2.msra.mxu0 0.0
  %432 = vmatprep.subr.mxu0 0.0
  %433 = vmatpush2.msra.mxu0 0.0
  %434 = vmatprep.subr.mxu0 0.0
  %435 = vmatpush2.msra.mxu0 0.0
  %436 = vmatprep.mubr.f32.mxu0 0.0
  %437 = vmatmul.mubr.f32.gmra.mxu0 %v367
  %v438 = vpop.f32.mrf.mxu0
  %v439 = vadd.f32 0.0, %v438
  %v440 = vpop.f32.mrf.mxu0
  %441 = vmatprep.mubr.f32.mxu0 0.0
  %442 = vmatmul.mubr.f32.gmra.mxu0 %v370
  %v443 = vpop.f32.mrf.mxu0
  %v444 = vadd.f32 0.0, %v443
  %v445 = vpop.f32.mrf.mxu0
  %446 = vdwg.mxu0
  %447 = vrot.lane.b32.xlu0 %v172, 64
  %v448 = vpop.permute.xlu0 %447
  %449 = vrot.lane.b32.xlu0 %v177, 64
  %v450 = vpop.permute.xlu0 %449
  %v454 = vsel %vm365, %v351, 0
  %v457 = vsel %vm365, %v356, 0
  %459 = vmatprep.subr.mxu0 0.0
  %460 = vmatpush1.msra.mxu0 0.0
  %461 = vmatprep.subr.mxu0 0.0
  %462 = vmatpush1.msra.mxu0 0.0
  %463 = vmatprep.subr.mxu0 0.0
  %464 = vmatpush1.msra.mxu0 0.0
  %465 = vmatprep.subr.mxu0 0.0
  %466 = vmatpush1.msra.mxu0 0.0
  %467 = vmatprep.subr.mxu0 0.0
  %468 = vmatpush1.msra.mxu0 0.0
  %469 = vmatprep.subr.mxu0 0.0
  %470 = vmatpush1.msra.mxu0 0.0
  %471 = vmatprep.subr.mxu0 0.0
  %472 = vmatpush1.msra.mxu0 0.0
  %473 = vmatprep.subr.mxu0 0.0
  %474 = vmatpush1.msra.mxu0 0.0
  %475 = vmatprep.subr.mxu0 0.0
  %476 = vmatpush1.msra.mxu0 0.0
  %477 = vmatprep.subr.mxu0 0.0
  %478 = vmatpush1.msra.mxu0 0.0
  %479 = vmatprep.subr.mxu0 0.0
  %480 = vmatpush1.msra.mxu0 0.0
  %481 = vmatprep.subr.mxu0 0.0
  %482 = vmatpush1.msra.mxu0 0.0
  %483 = vmatprep.subr.mxu0 0.0
  %484 = vmatpush1.msra.mxu0 0.0
  %485 = vmatprep.subr.mxu0 0.0
  %486 = vmatpush1.msra.mxu0 0.0
  %487 = vmatprep.subr.mxu0 0.0
  %488 = vmatpush1.msra.mxu0 %v450
  %489 = vmatprep.subr.mxu0 0.0
  %490 = vmatpush1.msra.mxu0 %v448
  %491 = vmatprep.subr.mxu0 0.0
  %492 = vmatpush2.msra.mxu0 0.0
  %493 = vmatprep.subr.mxu0 0.0
  %494 = vmatpush2.msra.mxu0 0.0
  %495 = vmatprep.subr.mxu0 0.0
  %496 = vmatpush2.msra.mxu0 0.0
  %497 = vmatprep.subr.mxu0 0.0
  %498 = vmatpush2.msra.mxu0 0.0
  %499 = vmatprep.subr.mxu0 0.0
  %500 = vmatpush2.msra.mxu0 0.0
  %501 = vmatprep.subr.mxu0 0.0
  %502 = vmatpush2.msra.mxu0 0.0
  %503 = vmatprep.subr.mxu0 0.0
  %504 = vmatpush2.msra.mxu0 0.0
  %505 = vmatprep.subr.mxu0 0.0
  %506 = vmatpush2.msra.mxu0 0.0
  %507 = vmatprep.subr.mxu0 0.0
  %508 = vmatpush2.msra.mxu0 0.0
  %509 = vmatprep.subr.mxu0 0.0
  %510 = vmatpush2.msra.mxu0 0.0
  %511 = vmatprep.subr.mxu0 0.0
  %512 = vmatpush2.msra.mxu0 0.0
  %513 = vmatprep.subr.mxu0 0.0
  %514 = vmatpush2.msra.mxu0 0.0
  %515 = vmatprep.subr.mxu0 0.0
  %516 = vmatpush2.msra.mxu0 0.0
  %517 = vmatprep.subr.mxu0 0.0
  %518 = vmatpush2.msra.mxu0 0.0
  %519 = vmatprep.subr.mxu0 0.0
  %520 = vmatpush2.msra.mxu0 0.0
  %521 = vmatprep.subr.mxu0 0.0
  %522 = vmatpush2.msra.mxu0 0.0
  %523 = vmatprep.mubr.f32.mxu0 0.0
  %524 = vmatmul.mubr.f32.gmra.mxu0 %v454
  %v525 = vpop.f32.mrf.mxu0
  %v526 = vadd.f32 0.0, %v525
  %v527 = vpop.f32.mrf.mxu0
  %528 = vmatprep.mubr.f32.mxu0 0.0
  %529 = vmatmul.mubr.f32.gmra.mxu0 %v457
  %v530 = vpop.f32.mrf.mxu0
  %v531 = vadd.f32 0.0, %v530
  %v532 = vpop.f32.mrf.mxu0
  %533 = vdwg.mxu0
  %v534 = vcombine.high %v439, 0.0
  %v536 = vunpack.c.l.s4 1983009808
  %v537 = vunpack.c.0.s8 %v536
  %v538 = vlaneseq
  %v539 = vshrl.u32 %v538, 7
  %v540 = vsub.s32 %v537, %v539
  %v541 = vrot.slane %v439, %v540
  %v543 = vunpack.c.l.s4 1983009808
  %v544 = vunpack.c.0.s8 %v543
  %v545 = vlaneseq
  %v546 = vshrl.u32 %v545, 7
  %v547 = vsub.s32 %v544, %v546
  %v548 = vrot.slane %v534, %v547
  %v549 = vcombine.high %v526, 0.0
  %v551 = vunpack.c.l.s4 1983009808
  %v552 = vunpack.c.0.s8 %v551
  %v553 = vlaneseq
  %v554 = vshrl.u32 %v553, 7
  %v555 = vsub.s32 %v552, %v554
  %v556 = vrot.slane %v526, %v555
  %v558 = vunpack.c.l.s4 1983009808
  %v559 = vunpack.c.0.s8 %v558
  %v560 = vlaneseq
  %v561 = vshrl.u32 %v560, 7
  %v562 = vsub.s32 %v559, %v561
  %v563 = vrot.slane %v549, %v562
  %v564 = vcombine.low %v541, %v556
  %v565 = vcombine.high %v541, %v556
  %v567 = vunpack.c.l.s4 1934713408
  %v568 = vunpack.c.0.s8 %v567
  %v569 = vlaneseq
  %v570 = vshrl.u32 %v569, 7
  %v571 = vsub.s32 %v568, %v570
  %v572 = vrot.slane %v564, %v571
  %v574 = vunpack.c.l.s4 1934713408
  %v575 = vunpack.c.0.s8 %v574
  %v576 = vlaneseq
  %v577 = vshrl.u32 %v576, 7
  %v578 = vsub.s32 %v575, %v577
  %v579 = vrot.slane %v565, %v578
  %v580 = vcombine.low %v548, %v563
  %v581 = vcombine.high %v548, %v563
  %v583 = vunpack.c.l.s4 1934713408
  %v584 = vunpack.c.0.s8 %v583
  %v585 = vlaneseq
  %v586 = vshrl.u32 %v585, 7
  %v587 = vsub.s32 %v584, %v586
  %v588 = vrot.slane %v580, %v587
  %v590 = vunpack.c.l.s4 1934713408
  %v591 = vunpack.c.0.s8 %v590
  %v592 = vlaneseq
  %v593 = vshrl.u32 %v592, 7
  %v594 = vsub.s32 %v591, %v593
  %v595 = vrot.slane %v581, %v594
  %v596 = vcombine.high %v572, 0.0
  %v597 = vcombine.high %v579, 0.0
  %v598 = vcombine.high %v588, 0.0
  %v599 = vcombine.high %v595, 0.0
  %v600 = vcombine.high %v444, 0.0
  %v602 = vunpack.c.l.s4 1983009808
  %v603 = vunpack.c.0.s8 %v602
  %v604 = vlaneseq
  %v605 = vshrl.u32 %v604, 7
  %v606 = vsub.s32 %v603, %v605
  %v607 = vrot.slane %v444, %v606
  %v609 = vunpack.c.l.s4 1983009808
  %v610 = vunpack.c.0.s8 %v609
  %v611 = vlaneseq
  %v612 = vshrl.u32 %v611, 7
  %v613 = vsub.s32 %v610, %v612
  %v614 = vrot.slane %v600, %v613
  %v615 = vcombine.high %v531, 0.0
  %v617 = vunpack.c.l.s4 1983009808
  %v618 = vunpack.c.0.s8 %v617
  %v619 = vlaneseq
  %v620 = vshrl.u32 %v619, 7
  %v621 = vsub.s32 %v618, %v620
  %v622 = vrot.slane %v531, %v621
  %v624 = vunpack.c.l.s4 1983009808
  %v625 = vunpack.c.0.s8 %v624
  %v626 = vlaneseq
  %v627 = vshrl.u32 %v626, 7
  %v628 = vsub.s32 %v625, %v627
  %v629 = vrot.slane %v615, %v628
  %v630 = vcombine.low %v607, %v622
  %v631 = vcombine.high %v607, %v622
  %v633 = vunpack.c.l.s4 1934713408
  %v634 = vunpack.c.0.s8 %v633
  %v635 = vlaneseq
  %v636 = vshrl.u32 %v635, 7
  %v637 = vsub.s32 %v634, %v636
  %v638 = vrot.slane %v630, %v637
  %v640 = vunpack.c.l.s4 1934713408
  %v641 = vunpack.c.0.s8 %v640
  %v642 = vlaneseq
  %v643 = vshrl.u32 %v642, 7
  %v644 = vsub.s32 %v641, %v643
  %v645 = vrot.slane %v631, %v644
  %v646 = vcombine.low %v614, %v629
  %v647 = vcombine.high %v614, %v629
  %v649 = vunpack.c.l.s4 1934713408
  %v650 = vunpack.c.0.s8 %v649
  %v651 = vlaneseq
  %v652 = vshrl.u32 %v651, 7
  %v653 = vsub.s32 %v650, %v652
  %v654 = vrot.slane %v646, %v653
  %v656 = vunpack.c.l.s4 1934713408
  %v657 = vunpack.c.0.s8 %v656
  %v658 = vlaneseq
  %v659 = vshrl.u32 %v658, 7
  %v660 = vsub.s32 %v657, %v659
  %v661 = vrot.slane %v647, %v660
  %v662 = vcombine.high %v638, 0.0
  %v663 = vcombine.high %v645, 0.0
  %v664 = vcombine.high %v654, 0.0
  %v665 = vcombine.high %v661, 0.0
  %667 = vrot.lane.b32.xlu0 %v596, 32
  %v668 = vpop.permute.xlu0 %667
  %671 = vrot.lane.b32.xlu0 %v579, 64
  %v672 = vpop.permute.xlu0 %671
  %675 = vrot.lane.b32.xlu0 %v597, 96
  %v676 = vpop.permute.xlu0 %675
  %679 = vrot.lane.b32.xlu0 %v598, 32
  %v680 = vpop.permute.xlu0 %679
  %683 = vrot.lane.b32.xlu0 %v595, 64
  %v684 = vpop.permute.xlu0 %683
  %687 = vrot.lane.b32.xlu0 %v599, 96
  %v688 = vpop.permute.xlu0 %687
  %691 = vrot.lane.b32.xlu0 %v662, 32
  %v692 = vpop.permute.xlu0 %691
  %695 = vrot.lane.b32.xlu0 %v645, 64
  %v696 = vpop.permute.xlu0 %695
  %699 = vrot.lane.b32.xlu0 %v663, 96
  %v700 = vpop.permute.xlu0 %699
  %703 = vrot.lane.b32.xlu0 %v664, 32
  %v704 = vpop.permute.xlu0 %703
  %707 = vrot.lane.b32.xlu0 %v661, 64
  %v708 = vpop.permute.xlu0 %707
  %711 = vrot.lane.b32.xlu0 %v665, 96
  %v712 = vpop.permute.xlu0 %711
  %v714 = vsel %vm186, %v572, %v668
  %vm715 = vcmask 523264
  %v716 = vsel %vm715, %v714, %v672
  %vm717 = vcmask 785408
  %v718 = vsel %vm717, %v716, %v676
  %v719 = vsel %vm186, %v588, %v680
  %v720 = vsel %vm715, %v719, %v684
  %v721 = vsel %vm717, %v720, %v688
  %v722 = vsel %vm186, %v638, %v692
  %v723 = vsel %vm715, %v722, %v696
  %v724 = vsel %vm717, %v723, %v700
  %v725 = vsel %vm186, %v654, %v704
  %v726 = vsel %vm715, %v725, %v708
  %v727 = vsel %vm717, %v726, %v712
  %v732 = vcombine.low %v718, %v721
  %v733 = vcombine.low %v724, %v727
  %v735 = vunpack.c.l.s4 1983009808
  %v736 = vunpack.c.0.s8 %v735
  %v737 = vlaneseq
  %v738 = vshrl.u32 %v737, 7
  %v739 = vsub.s32 %v736, %v738
  %v740 = vrot.slane %v732, %v739
  %v742 = vunpack.c.l.s4 1983009808
  %v743 = vunpack.c.0.s8 %v742
  %v744 = vlaneseq
  %v745 = vshrl.u32 %v744, 7
  %v746 = vsub.s32 %v743, %v745
  %v747 = vrot.slane %v733, %v746
  %v748 = vcombine.low %v740, %v747
  %750 = vst [vmem:[%s2] sm:$0xff] %v748
  // Predicated region
  $region10: #{self_attention_forward.1} parent=0 // pred_check
    _
  $region11: #{self_attention_forward.1} parent=0 // pred_check_branch
    %752 = sbr.rel (0) target = $region13
  $region12: #{self_attention_forward.1} parent=0 // pred_region
    _
  $region13: #{self_attention_forward.1} parent=0 // pred_fallthru
    _
  // Predicated region
  $region14: #{self_attention_forward.1} parent=0 // pred_check
    _
  $region15: #{self_attention_forward.1} parent=0 // pred_check_branch
    %754 = sbr.rel (0) target = $region17
  $region16: #{self_attention_forward.1} parent=0 // pred_region
    _
  $region17: #{self_attention_forward.1} parent=0 // pred_fallthru
    _

</llo_original>
